<compile_context>
chip_gen: v7x
topology: tpu7x:2x2x1
jax: 0.10.0
libtpu: 0.0.40
codegen_flags: <defaults>
</compile_context>

<pallas_src>
import functools

import jax
import jax.numpy as jnp
from jax.experimental import pallas as pl
from jax.experimental.pallas import tpu as pltpu

_LANE = 128
_SUB = 8
_BLOCK_BYTES_TARGET = 1 << 20   # ~1 MiB logits block per grid step
_BLOCK_BYTES_CAP = 2 << 20      # keep a (B, 8, TC) f32 block under ~2 MiB


def _bce_partial_kernel(x_ref, y_ref, w_ref, out_ref, *, rows_total, tile_r):
    """One (B, TR, TC) block: weighted BCE-with-logits, reduced over batch and
    sublane rows to a lane-dense (1, 1, TC) partial sum."""
    x = x_ref[...].astype(jnp.float32)   # logits,  (B, TR, TC)
    y = y_ref[...].astype(jnp.float32)   # targets, (B, TR, TC)
    w = w_ref[...].astype(jnp.float32)   # weights, (1, TR, TC)

    # Numerically stable BCE-with-logits (matches torch.nn.BCEWithLogitsLoss):
    #   loss = max(x, 0) - x*y + log(1 + exp(-|x|))
    pixel_loss = jnp.maximum(x, 0.0) - x * y + jnp.log1p(jnp.exp(-jnp.abs(x)))
    weighted = pixel_loss * w            # broadcast weights over the batch

    if rows_total % tile_r != 0:
        # Ragged last row-block: zero out rows past the real extent (their
        # VMEM contents are unspecified).  Only traced when needed.
        local_r = jax.lax.broadcasted_iota(jnp.int32, weighted.shape[1:], 0)
        mask = (pl.program_id(0) * tile_r + local_r) < rows_total
        weighted = jnp.where(mask[None, :, :], weighted, 0.0)

    # Cross-vreg (batch) adds on the VPU + sublane reduce on the XLU; output
    # stays lane-dense (TC >= 128).
    out_ref[...] = jnp.sum(weighted, axis=(0, 1), keepdims=True)


def _choose_tiles(batch, hw):
    """Pick (TR, TC, rows, hw_pad).  TC: multiple of 128, preferably dividing
    hw (avoids a pad copy), shrunk for large batches.  TR: multiple of 8 (or
    the full row extent), sized for ~1 MiB logits blocks."""
    max_tc = max(_LANE,
                 ((_BLOCK_BYTES_CAP // (batch * _SUB * 4)) // _LANE) * _LANE)
    candidates = [t for t in (512, 256, 128) if t <= max_tc] or [_LANE]
    tc = next((t for t in candidates if hw % t == 0), candidates[-1])

    hw_pad = -(-hw // tc) * tc           # != hw only when no candidate divides
    rows = hw_pad // tc

    tr = max(_SUB,
             ((_BLOCK_BYTES_TARGET // (batch * tc * 4)) // _SUB) * _SUB)
    if rows <= tr:
        tr = rows                        # single row-block; full-extent dim
    return tr, tc, rows, hw_pad


def pixel_weighted_bce_with_logits_loss(invar, outvar, pixel_weights):
    """invar: [B, H, W] logits; outvar: [B, H, W] targets in [0, 1];
    pixel_weights: [1, H, W].  Returns scalar float32 mean weighted loss."""
    B, H, W = invar.shape
    assert outvar.shape == (B, H, W)
    assert pixel_weights.shape == (1, H, W)
    hw = H * W

    # TODO(synk): for extremely large batches (B > ~2048) the whole-batch block
    # no longer fits VMEM; that case needs an extra "arbitrary" batch grid axis
    # (re-reading the weights once per batch tile).
    tr, tc, rows, hw_pad = _choose_tiles(B, hw)

    x = invar.reshape(B, hw)
    y = outvar.reshape(B, hw)
    w = pixel_weights.reshape(1, hw)
    if hw_pad != hw:
        # Rare path (H*W not a multiple of 128): pad with weight 0 so padded
        # pixels contribute exactly 0 to the sum.
        pad = hw_pad - hw
        x = jnp.pad(x, ((0, 0), (0, pad)))
        y = jnp.pad(y, ((0, 0), (0, pad)))
        w = jnp.pad(w, ((0, 0), (0, pad)))
    # Pure metadata reshapes (row-major split of the last dim).
    x = x.reshape(B, rows, tc)
    y = y.reshape(B, rows, tc)
    w = w.reshape(1, rows, tc)

    n_blk = pl.cdiv(rows, tr)
    kernel = functools.partial(_bce_partial_kernel, rows_total=rows, tile_r=tr)

    partials = pl.pallas_call(
        kernel,
        out_shape=jax.ShapeDtypeStruct((n_blk, 1, tc), jnp.float32),
        grid_spec=pltpu.PrefetchScalarGridSpec(
            num_scalar_prefetch=0,
            grid=(n_blk,),
            in_specs=[
                pl.BlockSpec((B, tr, tc), lambda i: (0, i, 0)),   # logits
                pl.BlockSpec((B, tr, tc), lambda i: (0, i, 0)),   # targets
                pl.BlockSpec((1, tr, tc), lambda i: (0, i, 0)),   # pixel weights
            ],
            out_specs=pl.BlockSpec((1, 1, tc), lambda i: (i, 0, 0)),
        ),
        compiler_params=pltpu.CompilerParams(
            dimension_semantics=("parallel",),      # independent row blocks
            vmem_limit_bytes=32 * 1024 * 1024,
        ),
    )(x, y, w)

    # Final (tiny) reduction + mean in plain JAX.
    return jnp.sum(partials) / jnp.float32(B * H * W)


def _reference(invar, outvar, pixel_weights):
    x = invar.astype(jnp.float32)
    y = outvar.astype(jnp.float32)
    loss = jnp.maximum(x, 0.0) - x * y + jnp.log1p(jnp.exp(-jnp.abs(x)))
    return jnp.mean(loss * pixel_weights.astype(jnp.float32))


if __name__ == "__main__":
    B, H, W = 2, 16, 16

    key = jax.random.PRNGKey(0)
    k1, k2, k3 = jax.random.split(key, 3)

    invar = jax.random.normal(k1, (B, H, W), dtype=jnp.float32)              # logits
    outvar = (jax.random.uniform(k2, (B, H, W)) > 0.5).astype(jnp.float32)   # targets
    # Deterministic "registered buffer" pixel weights, shape [1, H, W].
    pixel_weights = jax.random.uniform(k3, (1, H, W), dtype=jnp.float32) + 0.5

    loss = pixel_weighted_bce_with_logits_loss(invar, outvar, pixel_weights)
    loss = jax.block_until_ready(loss)

    ref = _reference(invar, outvar, pixel_weights)
    assert jnp.allclose(loss, ref, rtol=1e-5, atol=1e-6), (loss, ref)

    print("KERNEL_OK")
</pallas_src>

<mosaic_0001>
module attributes {stable_mosaic.version = 11 : i64} {
  func.func @_bce_partial_kernel(%arg0: i32, %arg1: memref<2x1x256xf32, #tpu.memory_space<vmem>>, %arg2: memref<2x1x256xf32, #tpu.memory_space<vmem>>, %arg3: memref<1x1x256xf32, #tpu.memory_space<vmem>>, %arg4: memref<1x1x256xf32, #tpu.memory_space<vmem>>) attributes {dimension_semantics = [#tpu.dimension_semantics<parallel>], iteration_bounds = array<i64: 1>, scalar_prefetch = 0 : i64, scratch_operands = 0 : i64, tpu.core_type = #tpu.core_type<tc>, window_params = [{transform_indices = @transform_0, window_bounds = array<i64: 2, 1, 256>}, {transform_indices = @transform_1, window_bounds = array<i64: 2, 1, 256>}, {transform_indices = @transform_2, window_bounds = array<i64: 1, 1, 256>}, {transform_indices = @transform_3, window_bounds = array<i64: 1, 1, 256>}]} {
    %c0 = arith.constant 0 : index
    %c0_0 = arith.constant 0 : index
    %c0_1 = arith.constant 0 : index
    %0 = vector.load %arg1[%c0, %c0_0, %c0_1] : memref<2x1x256xf32, #tpu.memory_space<vmem>>, vector<2x1x256xf32>
    %c0_2 = arith.constant 0 : index
    %c0_3 = arith.constant 0 : index
    %c0_4 = arith.constant 0 : index
    %1 = vector.load %arg2[%c0_2, %c0_3, %c0_4] : memref<2x1x256xf32, #tpu.memory_space<vmem>>, vector<2x1x256xf32>
    %c0_5 = arith.constant 0 : index
    %c0_6 = arith.constant 0 : index
    %c0_7 = arith.constant 0 : index
    %2 = vector.load %arg3[%c0_5, %c0_6, %c0_7] : memref<1x1x256xf32, #tpu.memory_space<vmem>>, vector<1x1x256xf32>
    %cst = arith.constant 0.000000e+00 : f32
    %3 = vector.broadcast %cst : f32 to vector<2x1x256xf32>
    %4 = arith.maximumf %0, %3 : vector<2x1x256xf32>
    %5 = arith.mulf %0, %1 : vector<2x1x256xf32>
    %6 = arith.subf %4, %5 : vector<2x1x256xf32>
    %7 = math.absf %0 : vector<2x1x256xf32>
    %cst_8 = arith.constant 0.000000e+00 : f32
    %8 = vector.broadcast %cst_8 : f32 to vector<2x1x256xf32>
    %9 = arith.subf %8, %7 : vector<2x1x256xf32>
    %10 = math.exp %9 : vector<2x1x256xf32>
    %11 = math.log1p %10 : vector<2x1x256xf32>
    %12 = arith.addf %6, %11 : vector<2x1x256xf32>
    %13 = vector.broadcast %2 : vector<1x1x256xf32> to vector<2x1x256xf32>
    %14 = arith.mulf %12, %13 : vector<2x1x256xf32>
    %cst_9 = arith.constant dense<0.000000e+00> : vector<256xf32>
    %15 = vector.multi_reduction <add>, %14, %cst_9 [0, 1] : vector<2x1x256xf32> to vector<256xf32>
    %16 = vector.shape_cast %15 : vector<256xf32> to vector<1x1x256xf32>
    %c0_10 = arith.constant 0 : index
    %c0_11 = arith.constant 0 : index
    %c0_12 = arith.constant 0 : index
    %17 = vector.load %arg4[%c0_10, %c0_11, %c0_12] : memref<1x1x256xf32, #tpu.memory_space<vmem>>, vector<1x1x256xf32>
    tpu.vector_store %arg4[%c0_10, %c0_11, %c0_12], %16 {strides = array<i32>} : memref<1x1x256xf32, #tpu.memory_space<vmem>>, vector<1x1x256xf32>,
    return
  }
  func.func @transform_0(%arg0: i32) -> (i32, i32, i32) {
    %c0_i32 = arith.constant 0 : i32
    %c0_i32_0 = arith.constant 0 : i32
    %c0_i32_1 = arith.constant 0 : i32
    return %c0_i32, %arg0, %c0_i32_0 : i32, i32, i32
  }
  func.func @transform_1(%arg0: i32) -> (i32, i32, i32) {
    %c0_i32 = arith.constant 0 : i32
    %c0_i32_0 = arith.constant 0 : i32
    %c0_i32_1 = arith.constant 0 : i32
    return %c0_i32, %arg0, %c0_i32_0 : i32, i32, i32
  }
  func.func @transform_2(%arg0: i32) -> (i32, i32, i32) {
    %c0_i32 = arith.constant 0 : i32
    %c0_i32_0 = arith.constant 0 : i32
    %c0_i32_1 = arith.constant 0 : i32
    return %c0_i32, %arg0, %c0_i32_0 : i32, i32, i32
  }
  func.func @transform_3(%arg0: i32) -> (i32, i32, i32) {
    %c0_i32 = arith.constant 0 : i32
    %c0_i32_0 = arith.constant 0 : i32
    %c0_i32_1 = arith.constant 0 : i32
    return %arg0, %c0_i32, %c0_i32_0 : i32, i32, i32
  }
}

</mosaic_0001>

<llo_original>
// kernel: tpu_custom_call.1
$region0: #{tpu_custom_call.1}
  #allocation0 [shape = 'u32[]', space=smem, size = 0x4, offset = 0x4, fixed_abs, tag = 'smem constant byte address 0x4 - core index']
  #allocation1 [shape = 'u32[144,128]{1,0:T(1,128)}', space=vmem, size = 0x12000, scoped, tag = 'internal scratch']
  %s0 = inlined_call_operand.hbm [shape: f32[2,1,256], index: 0, kind: input, shape index: {}]
  %s1 = inlined_call_operand.hbm [shape: f32[2,1,256], index: 1, kind: input, shape index: {}]
  %s2 = inlined_call_operand.vmem [shape: f32[1,1,256], index: 2, kind: input, shape index: {}]
  %s3 = inlined_call_operand.hbm [shape: f32[1,1,256], index: 3, kind: output, shape index: {}]
  %s4 = sld [smem:[#allocation0]]
  $region30: #{tpu_custom_call.1} parent=0
    _
  %s6 = ssub.s32 1, %s4
  %s7 = scalar_select 0, %s6, %s4
  $region1: #{tpu_custom_call.1} parent=0
    #allocation2 [shape = 'u8[2048]{0}', space=vmem, size = 0x800, scoped, tag = 'input window, operand 0, single buffered']
    #allocation3 [shape = 's32[1]{0}', space=sflag, size = 0x4, scoped, tag = 'scoped memory for tpu_custom_call.1']
    #allocation4 [shape = 's32[1]{0}', space=sflag, size = 0x4, scoped, tag = 'scoped memory for tpu_custom_call.1']
    #allocation5 [shape = 'u8[2048]{0}', space=vmem, size = 0x800, scoped, tag = 'input window, operand 1, single buffered']
    #allocation6 [shape = 's32[1]{0}', space=sflag, size = 0x4, scoped, tag = 'scoped memory for tpu_custom_call.1']
    #allocation7 [shape = 'u8[1024]{0}', space=vmem, size = 0x400, scoped, tag = 'output window, operand 0, single buffered']
    %8 = vsyncpa [#allocation3], 0
    %9 = vsyncpa [#allocation6], 0
    %10 = vsyncpa [#allocation4], 0
    // Predicated region
    $region2: #{tpu_custom_call.1} parent=1 // pred_check
      _
    $region3: #{tpu_custom_call.1} parent=1 // pred_check_branch
      %12 = sbr.rel (0) target = $region5
    $region4: #{tpu_custom_call.1} parent=1 // pred_region
      %s14 = ssub.s32 64, 64
      %15 = vsyncadd [#allocation3], %s14
      %s16 = sshll.u32 [#allocation2], 4
      %s17 = int_to_ptr.vmem [resolvable:$true] %s16
      %22 = dma.hbm_to_vmem [thread:$0]  %s0, 64, %s17, [#allocation3], 32, 32, 2
    $region5: #{tpu_custom_call.1} parent=1 // pred_fallthru
      _
    // Predicated region
    $region6: #{tpu_custom_call.1} parent=1 // pred_check
      _
    $region7: #{tpu_custom_call.1} parent=1 // pred_check_branch
      %24 = sbr.rel (0) target = $region9
    $region8: #{tpu_custom_call.1} parent=1 // pred_region
      %s26 = ssub.s32 64, 64
      %27 = vsyncadd [#allocation6], %s26
      %s28 = sshll.u32 [#allocation5], 4
      %s29 = int_to_ptr.vmem [resolvable:$true] %s28
      %34 = dma.hbm_to_vmem [thread:$0]  %s1, 64, %s29, [#allocation6], 32, 32, 2
    $region9: #{tpu_custom_call.1} parent=1 // pred_fallthru
      _
    // Predicated region
    $region10: #{tpu_custom_call.1} parent=1 // pred_check
      _
    $region11: #{tpu_custom_call.1} parent=1 // pred_check_branch
      %36 = sbr.rel (0) target = $region13
    $region12: #{tpu_custom_call.1} parent=1 // pred_region
      _
    $region13: #{tpu_custom_call.1} parent=1 // pred_fallthru
      _
    // Predicated region
    $region14: #{tpu_custom_call.1} parent=1 // pred_check
      _
    $region15: #{tpu_custom_call.1} parent=1 // pred_check_branch
      %38 = sbr.rel (0) target = $region17
    $region16: #{tpu_custom_call.1} parent=1 // pred_region
      %39 = dma.done [#allocation3], 64
    $region17: #{tpu_custom_call.1} parent=1 // pred_fallthru
      _
    // Predicated region
    $region18: #{tpu_custom_call.1} parent=1 // pred_check
      _
    $region19: #{tpu_custom_call.1} parent=1 // pred_check_branch
      %41 = sbr.rel (0) target = $region21
    $region20: #{tpu_custom_call.1} parent=1 // pred_region
      %42 = dma.done [#allocation6], 64
    $region21: #{tpu_custom_call.1} parent=1 // pred_fallthru
      _
    %v43 = vld [vmem:[#allocation2] sm:$0x3]
    %v44 = vld [vmem:[#allocation2 + $0x2] sm:$0x3]
    %v45 = vld [vmem:[#allocation5] sm:$0x3]
    %v46 = vld [vmem:[#allocation5 + $0x2] sm:$0x3]
    %v47 = vld [vmem:[%s2] sm:$0x3]
    %v48 = vmax.f32 %v43, 0.0
    %v49 = vmax.f32 %v44, 0.0
    %v50 = vmul.f32 %v43, %v45
    %v51 = vmul.f32 %v44, %v46
    %v52 = vsub.f32 %v48, %v50
    %v53 = vsub.f32 %v49, %v51
    %v54 = vand.u32 2147483647, %v43
    %v55 = vand.u32 2147483647, %v44
    %v56 = vsub.f32 0.0, %v54
    %v57 = vsub.f32 0.0, %v55
    %v58 = vmul.f32 %v56, 1.442695
    %v59 = vpow.pop %v58
    %v60 = vmul.f32 %v57, 1.442695
    %v61 = vpow.pop %v60
    %v62 = vadd.f32 %v59, 1.0
    %v63 = vlog2.pop %v62
    %v64 = vmul.f32 %v63, 0.6931472
    %v65 = vmul.f32 -0.5, %v59
    %v66 = vadd.f32 %v65, 1.0
    %v67 = vmul.f32 %v66, %v59
    %v68 = vand.u32 2147483647, %v59
    %vm69 = vcmp.lt.f32.partialorder %v68, 0.0004427343
    %v70 = vsel %vm69, %v67, %v64
    %v71 = vadd.f32 %v61, 1.0
    %v72 = vlog2.pop %v71
    %v73 = vmul.f32 %v72, 0.6931472
    %v74 = vmul.f32 -0.5, %v61
    %v75 = vadd.f32 %v74, 1.0
    %v76 = vmul.f32 %v75, %v61
    %v77 = vand.u32 2147483647, %v61
    %vm78 = vcmp.lt.f32.partialorder %v77, 0.0004427343
    %v79 = vsel %vm78, %v76, %v73
    %v80 = vadd.f32 %v52, %v70
    %v81 = vadd.f32 %v53, %v79
    %v82 = vmul.f32 %v80, %v47
    %v83 = vmul.f32 %v81, %v47
    %v86 = vlaneseq
    %v87 = vshrl.u32 %v86, 7
    %v88 = vsub.s32 0, %v87
    %v89 = vrot.slane %v82, %v88
    %v90 = vlaneseq
    %v91 = vshrl.u32 %v90, 7
    %v92 = vsub.s32 1, %v91
    %v93 = vrot.slane %v82, %v92
    %v94 = vlaneseq
    %v95 = vshrl.u32 %v94, 7
    %v96 = vsub.s32 0, %v95
    %v97 = vrot.slane %v83, %v96
    %v98 = vlaneseq
    %v99 = vshrl.u32 %v98, 7
    %v100 = vsub.s32 1, %v99
    %v101 = vrot.slane %v83, %v100
    %vm106 = vcmask 1040384
    %v107 = vsel %vm106, %v89, 0.0
    %v108 = vsel %vm106, %v97, 0.0
    %v109 = vadd.f32 %v107, %v108
    %v110 = vrot.slane %v109, 4
    %v111 = vadd.f32 %v109, %v110
    %v112 = vrot.slane %v111, 2
    %v113 = vadd.f32 %v111, %v112
    %v114 = vrot.slane %v113, 1
    %v115 = vadd.f32 %v113, %v114
    %v116 = vsel %vm106, %v93, 0.0
    %v117 = vsel %vm106, %v101, 0.0
    %v118 = vadd.f32 %v116, %v117
    %v119 = vrot.slane %v118, 4
    %v120 = vadd.f32 %v118, %v119
    %v121 = vrot.slane %v120, 2
    %v122 = vadd.f32 %v120, %v121
    %v123 = vrot.slane %v122, 1
    %v124 = vadd.f32 %v122, %v123
    %v127 = vcombine.low %v115, %v124
    %v129 = vunpack.c.l.s4 1966171168
    %v130 = vunpack.c.0.s8 %v129
    %v131 = vlaneseq
    %v132 = vshrl.u32 %v131, 7
    %v133 = vsub.s32 %v130, %v132
    %v134 = vrot.slane %v127, %v133
    %v136 = vunpack.c.l.s4 1966171168
    %v137 = vunpack.c.0.s8 %v136
    %v138 = vlaneseq
    %v139 = vshrl.u32 %v138, 7
    %v140 = vsub.s32 %v137, %v139
    %v141 = vrot.slane %v134, %v140
    %v143 = vlaneseq
    %vm144 = vcmp.ge.s32.totalorder %v143, 0
    %vm145 = vcmp.lt.s32.totalorder %v143, 256
    %vm146 = vmand %vm144, %vm145
    %147 = vst.msk [vmem:[#allocation7] sm:$0x3] %vm146, %v141
    // Predicated region
    $region22: #{tpu_custom_call.1} parent=1 // pred_check
      _
    $region23: #{tpu_custom_call.1} parent=1 // pred_check_branch
      %149 = sbr.rel (0) target = $region25
    $region24: #{tpu_custom_call.1} parent=1 // pred_region
      %s151 = ssub.s32 32, 32
      %152 = vsyncadd [#allocation4], %s151
      %s154 = sshll.u32 [#allocation7], 4
      %s155 = int_to_ptr.vmem [resolvable:$true] %s154
      %157 = dma.vmem_to_hbm [thread:$0]  %s155, 32, %s3, [#allocation4]
    $region25: #{tpu_custom_call.1} parent=1 // pred_fallthru
      _
    // Predicated region
    $region26: #{tpu_custom_call.1} parent=1 // pred_check
      _
    $region27: #{tpu_custom_call.1} parent=1 // pred_check_branch
      %159 = sbr.rel (0) target = $region29
    $region28: #{tpu_custom_call.1} parent=1 // pred_region
      %160 = dma.done [#allocation4], 32
    $region29: #{tpu_custom_call.1} parent=1 // pred_fallthru
      _
    %161 = vsyncpa [#allocation3], 1
    %162 = vsyncpa [#allocation6], 1
    %163 = vsyncpa [#allocation4], 1

</llo_original>
